<compile_context>
chip_gen: v6e
topology: v6e:2x2x1
jax: 0.10.0
libtpu: 0.0.40
codegen_flags: <defaults>
</compile_context>

<pallas_src>
import functools

import jax
import jax.numpy as jnp
from jax.experimental import pallas as pl
from jax.experimental.pallas import tpu as pltpu

NUM_CLASSES = 3
NUM_CLASS_PAD = 8                 # pad one-hot rows to the 8-sublane tile
MAX_TILE_N = 4096                 # cap on reduction-axis tile (rows), multiple of 128
TARGET_BLOCK_BYTES = 8 << 20      # per-buffer input block target
MIN_SPLIT_BLOCK_BYTES = 4 << 20   # only split D (v7x megacore) if blocks stay >= this
TINY_BYTES = 1 << 20              # below this, plain XLA beats a pallas_call


def _round_up(x, m):
    return ((x + m - 1) // m) * m


def _choose_tiles(n, d, itemsize):
    """Pick (tile_n, tile_d): full-width D unless huge; tile_n from an ~8MiB budget."""
    n128 = _round_up(max(n, 1), 128)

    def tile_n_for(tile_d):
        cap = TARGET_BLOCK_BYTES // max(1, tile_d * itemsize)
        tn = min(MAX_TILE_N, n128, (cap // 128) * 128)
        return max(tn, 128)

    tile_d = d
    if d % 128 == 0:
        # Huge-D safety valve: shrink along exact 128-aligned divisors of d until a
        # minimal 128-row block fits the budget.
        while (tile_d % 2 == 0 and (tile_d // 2) % 128 == 0
               and 128 * tile_d * itemsize > TARGET_BLOCK_BYTES):
            tile_d //= 2
        # v7x megacore gate: expose a 2nd D tile only if each half keeps >= 4 MiB
        # blocks (harmless on single-TC v5e/v6e: same bytes, same step count).
        if tile_d == d and d % 256 == 0:
            half = d // 2
            if tile_n_for(half) * half * itemsize >= MIN_SPLIT_BLOCK_BYTES:
                tile_d = half
    return tile_n_for(tile_d), tile_d


def _batch_pool_kernel(pol_ref, x_ref, out_ref, acc_ref, cnt_ref,
                       *, n_rows, tile_n, ragged):
    k = pl.program_id(1)                          # N (reduction) step — last grid axis

    @pl.when(k == 0)
    def _init():
        acc_ref[...] = jnp.zeros_like(acc_ref)
        cnt_ref[...] = jnp.zeros_like(cnt_ref)

    x = x_ref[...]                                # (tile_n, tile_d)
    if ragged:
        # Last N block reads past the (unpadded) input in HBM: zero those rows so
        # stale VMEM bits (possibly NaN/Inf) cannot poison the MXU accumulation.
        row = k * tile_n + jax.lax.broadcasted_iota(jnp.int32, x.shape, 0)
        x = jnp.where(row < n_rows, x, jnp.zeros_like(x))

    pol = pol_ref[...]                            # (1, tile_n) int32, padded labels = -1
    class_ids = jax.lax.broadcasted_iota(jnp.int32, (NUM_CLASS_PAD, tile_n), 0)
    one_hot = class_ids == jnp.broadcast_to(pol, (NUM_CLASS_PAD, tile_n))   # bool

    # Class scatter-add == one_hot @ x on the MXU (f32 accumulation); per-class
    # counts ride in the XLU slot — both free filler under the DMA.
    acc_ref[...] += jnp.dot(one_hot.astype(x.dtype), x,
                            preferred_element_type=jnp.float32)
    cnt_ref[...] += jnp.sum(one_hot.astype(jnp.float32), axis=-1, keepdims=True)

    @pl.when(k == pl.num_programs(1) - 1)
    def _finalize():
        counts = cnt_ref[...]
        # exact ==0.0 compare is safe: counts are exact integer sums in f32
        counts = jnp.where(counts == 0.0, jnp.float32(1.0), counts)
        out_ref[...] = acc_ref[...] * pl.reciprocal(counts, approx=False)


def _reference(inputs, porality):
    """Pure-JAX reference mirroring the PyTorch loop semantics."""
    inputs = jnp.asarray(inputs, dtype=jnp.float32)
    porality = jnp.asarray(porality)
    one_hot = (jnp.arange(NUM_CLASSES)[:, None] == porality[None, :]).astype(jnp.float32)
    sums = one_hot @ inputs
    counts = one_hot.sum(axis=-1, keepdims=True)
    counts = jnp.where(counts == 0.0, 1.0, counts)
    return sums / counts


def batch_pool_loss(inputs, porality, force_pallas=False):
    """Pallas implementation of BatchPoolLoss.forward -> (3, D) float32."""
    inputs = jnp.asarray(inputs)
    if not jnp.issubdtype(inputs.dtype, jnp.floating):
        inputs = inputs.astype(jnp.float32)
    porality = jnp.asarray(porality).astype(jnp.int32)

    n, d = inputs.shape
    itemsize = inputs.dtype.itemsize

    # Tiny batches (incl. the module's native 8x32): pallas_call fixed overhead
    # dominates and XLA's fused one-hot matmul is already optimal.
    if not force_pallas and n * d * itemsize < TINY_BYTES:
        return _reference(inputs, porality)

    tile_n, tile_d = _choose_tiles(n, d, itemsize)
    n_pad = _round_up(n, tile_n)
    n_tiles = n_pad // tile_n
    d_tiles = pl.cdiv(d, tile_d)              # tile_d == d or an exact divisor of d

    # Only the tiny label vector gets padded host-side (-1 never hits a class);
    # the (N, D) input is read in place — no full-array HBM copy.
    pol = porality
    if n_pad != n:
        pol = jnp.pad(pol, (0, n_pad - n), constant_values=-1)
    pol2d = pol.reshape(1, n_pad)

    kernel = functools.partial(_batch_pool_kernel, n_rows=n, tile_n=tile_n,
                               ragged=(n % tile_n != 0))

    # Double-buffered VMEM footprint (input + labels + output + scratch).
    lane_d = max(tile_d, 128)
    vmem_needed = (2 * tile_n * tile_d * itemsize
                   + 2 * 8 * tile_n * 4
                   + 3 * NUM_CLASS_PAD * lane_d * 4
                   + NUM_CLASS_PAD * 128 * 4)
    vmem_limit = int(max(32 << 20, vmem_needed + vmem_needed // 2))

    cost = pl.CostEstimate(
        flops=2 * NUM_CLASS_PAD * n * d,
        bytes_accessed=n * d * itemsize + n * 4 + NUM_CLASS_PAD * d * 4,
        transcendentals=0)

    out = pl.pallas_call(
        kernel,
        out_shape=jax.ShapeDtypeStruct((NUM_CLASS_PAD, d), jnp.float32),
        grid_spec=pltpu.PrefetchScalarGridSpec(
            num_scalar_prefetch=0,
            grid=(d_tiles, n_tiles),          # D parallel, N (reduction) last
            in_specs=[
                pl.BlockSpec((1, tile_n), lambda j, k: (0, k)),        # labels
                pl.BlockSpec((tile_n, tile_d), lambda j, k: (k, j)),   # inputs
            ],
            out_specs=pl.BlockSpec((NUM_CLASS_PAD, tile_d), lambda j, k: (0, j)),
            scratch_shapes=[
                pltpu.VMEM((NUM_CLASS_PAD, tile_d), jnp.float32),      # class sums
                pltpu.VMEM((NUM_CLASS_PAD, 1), jnp.float32),           # class counts
            ],
        ),
        compiler_params=pltpu.CompilerParams(
            dimension_semantics=("parallel", "arbitrary"),
            vmem_limit_bytes=vmem_limit),
        cost_estimate=cost,
    )(pol2d, inputs)

    return out[:NUM_CLASSES]


if __name__ == "__main__":
    key = jax.random.PRNGKey(0)
    k1, k2, k3, k4, k5, k6 = jax.random.split(key, 6)

    # Case 1: module-native small shapes (batch=8, attention_dim*2=32).
    N, D = 8, 32
    x1 = jax.random.normal(k1, (N, D), dtype=jnp.float32)
    p1 = jax.random.randint(k2, (N,), 0, NUM_CLASSES, dtype=jnp.int32)
    ref1 = _reference(x1, p1)
    out1_auto = jax.block_until_ready(batch_pool_loss(x1, p1))                 # XLA fast path
    out1_pal = jax.block_until_ready(batch_pool_loss(x1, p1, force_pallas=True))
    assert out1_pal.shape == (NUM_CLASSES, D)
    assert jnp.allclose(out1_auto, ref1, atol=1e-5, rtol=1e-5), "mismatch (tiny / auto)"
    assert jnp.allclose(out1_pal, ref1, atol=1e-5, rtol=1e-5), "mismatch (tiny / pallas)"

    # Case 2: tiled path — D split gate, multi-step N reduction, ragged last N
    # block masked in-kernel, porality padding.
    N2, D2 = 9000, 512
    x2 = jax.random.normal(k3, (N2, D2), dtype=jnp.float32)
    p2 = jax.random.randint(k4, (N2,), 0, NUM_CLASSES, dtype=jnp.int32)
    out2 = jax.block_until_ready(batch_pool_loss(x2, p2))
    ref2 = _reference(x2, p2)
    assert out2.shape == (NUM_CLASSES, D2)
    assert jnp.allclose(out2, ref2, atol=1e-4, rtol=1e-4), "mismatch (tiled f32)"

    # Case 3: bf16 inputs stay bf16 on the HBM read path; f32 accumulation.
    N3, D3 = 1000, 256
    x3 = jax.random.normal(k5, (N3, D3), dtype=jnp.bfloat16)
    p3 = jax.random.randint(k6, (N3,), 0, NUM_CLASSES, dtype=jnp.int32)
    out3 = jax.block_until_ready(batch_pool_loss(x3, p3, force_pallas=True))
    ref3 = _reference(x3, p3)
    assert jnp.allclose(out3, ref3, atol=1e-3, rtol=1e-3), "mismatch (bf16)"

    print("KERNEL_OK")
</pallas_src>

<mosaic_0001>
module attributes {stable_mosaic.version = 11 : i64} {
  func.func @_batch_pool_kernel(%arg0: i32, %arg1: i32, %arg2: memref<1x128xi32, #tpu.memory_space<vmem>>, %arg3: memref<128x32xf32, #tpu.memory_space<vmem>>, %arg4: memref<8x32xf32, #tpu.memory_space<vmem>>, %arg5: memref<8x32xf32, #tpu.memory_space<vmem>>, %arg6: memref<8x1xf32, #tpu.memory_space<vmem>>) attributes {dimension_semantics = [#tpu.dimension_semantics<parallel>, #tpu.dimension_semantics<arbitrary>], iteration_bounds = array<i64: 1, 1>, scalar_prefetch = 0 : i64, scratch_operands = 2 : i64, tpu.core_type = #tpu.core_type<tc>, window_params = [{transform_indices = @transform_0, window_bounds = array<i64: 1, 128>}, {transform_indices = @transform_1, window_bounds = array<i64: 128, 32>}, {transform_indices = @transform_2, window_bounds = array<i64: 8, 32>}]} {
    %c0_i32 = arith.constant 0 : i32
    %0 = arith.cmpi eq, %arg1, %c0_i32 : i32
    %1 = arith.extui %0 : i1 to i32
    %c0_i32_0 = arith.constant 0 : i32
    %2 = arith.cmpi ne, %1, %c0_i32_0 : i32
    scf.if %2 {
      %cst_16 = arith.constant 0.000000e+00 : f32
      %33 = vector.broadcast %cst_16 : f32 to vector<8x32xf32>
      %c0_17 = arith.constant 0 : index
      %c0_18 = arith.constant 0 : index
      %34 = vector.load %arg5[%c0_17, %c0_18] : memref<8x32xf32, #tpu.memory_space<vmem>>, vector<8x32xf32>
      tpu.vector_store %arg5[%c0_17, %c0_18], %33 {strides = array<i32>} : memref<8x32xf32, #tpu.memory_space<vmem>>, vector<8x32xf32>,
      %cst_19 = arith.constant 0.000000e+00 : f32
      %35 = vector.broadcast %cst_19 : f32 to vector<8x1xf32>
      %c0_20 = arith.constant 0 : index
      %c0_21 = arith.constant 0 : index
      %36 = vector.load %arg6[%c0_20, %c0_21] : memref<8x1xf32, #tpu.memory_space<vmem>>, vector<8x1xf32>
      tpu.vector_store %arg6[%c0_20, %c0_21], %35 {strides = array<i32>} : memref<8x1xf32, #tpu.memory_space<vmem>>, vector<8x1xf32>,
    } else {
    }
    %c0 = arith.constant 0 : index
    %c0_1 = arith.constant 0 : index
    %3 = vector.load %arg3[%c0, %c0_1] : memref<128x32xf32, #tpu.memory_space<vmem>>, vector<128x32xf32>
    %c128_i32 = arith.constant 128 : i32
    %4 = arith.muli %arg1, %c128_i32 : i32
    %5 = tpu.iota {dimensions = array<i32: 0>} : vector<128x32xi32>
    %6 = vector.broadcast %4 : i32 to vector<128x32xi32>
    %7 = arith.addi %6, %5 : vector<128x32xi32>
    %c8_i32 = arith.constant 8 : i32
    %8 = vector.broadcast %c8_i32 : i32 to vector<128x32xi32>
    %9 = arith.cmpi slt, %7, %8 : vector<128x32xi32>
    %cst = arith.constant 0.000000e+00 : f32
    %10 = vector.broadcast %cst : f32 to vector<128x32xf32>
    %11 = arith.select %9, %3, %10 : vector<128x32xi1>, vector<128x32xf32>
    %c0_2 = arith.constant 0 : index
    %c0_3 = arith.constant 0 : index
    %12 = vector.load %arg2[%c0_2, %c0_3] : memref<1x128xi32, #tpu.memory_space<vmem>>, vector<1x128xi32>
    %13 = tpu.iota {dimensions = array<i32: 0>} : vector<8x128xi32>
    %14 = vector.shape_cast %12 : vector<1x128xi32> to vector<1x128xi32>
    %15 = vector.broadcast %14 : vector<1x128xi32> to vector<8x128xi32>
    %16 = arith.cmpi eq, %13, %15 : vector<8x128xi32>
    %c0_4 = arith.constant 0 : index
    %c0_5 = arith.constant 0 : index
    %17 = vector.load %arg5[%c0_4, %c0_5] : memref<8x32xf32, #tpu.memory_space<vmem>>, vector<8x32xf32>
    %18 = arith.extui %16 : vector<8x128xi1> to vector<8x128xi32>
    %19 = arith.sitofp %18 : vector<8x128xi32> to vector<8x128xf32>
    %cst_6 = arith.constant dense<0.000000e+00> : vector<8x32xf32>
    %20 = tpu.matmul %19, %11, %cst_6 {dimension_numbers = #tpu.dot_dimension_numbers<[1], [0], [0], [1], [0, 0, 1, 1], [], []>} : vector<8x128xf32>, vector<128x32xf32>, vector<8x32xf32> -> vector<8x32xf32>
    %21 = arith.addf %17, %20 : vector<8x32xf32>
    %c0_7 = arith.constant 0 : index
    %c0_8 = arith.constant 0 : index
    %22 = vector.load %arg5[%c0_7, %c0_8] : memref<8x32xf32, #tpu.memory_space<vmem>>, vector<8x32xf32>
    tpu.vector_store %arg5[%c0_7, %c0_8], %21 {strides = array<i32>} : memref<8x32xf32, #tpu.memory_space<vmem>>, vector<8x32xf32>,
    %c0_9 = arith.constant 0 : index
    %c0_10 = arith.constant 0 : index
    %23 = vector.load %arg6[%c0_9, %c0_10] : memref<8x1xf32, #tpu.memory_space<vmem>>, vector<8x1xf32>
    %24 = arith.extui %16 : vector<8x128xi1> to vector<8x128xi32>
    %25 = arith.sitofp %24 : vector<8x128xi32> to vector<8x128xf32>
    %cst_11 = arith.constant dense<0.000000e+00> : vector<8xf32>
    %26 = vector.multi_reduction <add>, %25, %cst_11 [1] : vector<8x128xf32> to vector<8xf32>
    %27 = vector.shape_cast %26 : vector<8xf32> to vector<8x1xf32>
    %28 = arith.addf %23, %27 : vector<8x1xf32>
    %c0_12 = arith.constant 0 : index
    %c0_13 = arith.constant 0 : index
    %29 = vector.load %arg6[%c0_12, %c0_13] : memref<8x1xf32, #tpu.memory_space<vmem>>, vector<8x1xf32>
    tpu.vector_store %arg6[%c0_12, %c0_13], %28 {strides = array<i32>} : memref<8x1xf32, #tpu.memory_space<vmem>>, vector<8x1xf32>,
    %c0_i32_14 = arith.constant 0 : i32
    %30 = arith.cmpi eq, %arg1, %c0_i32_14 : i32
    %31 = arith.extui %30 : i1 to i32
    %c0_i32_15 = arith.constant 0 : i32
    %32 = arith.cmpi ne, %31, %c0_i32_15 : i32
    scf.if %32 {
      %c0_16 = arith.constant 0 : index
      %c0_17 = arith.constant 0 : index
      %33 = vector.load %arg6[%c0_16, %c0_17] : memref<8x1xf32, #tpu.memory_space<vmem>>, vector<8x1xf32>
      %cst_18 = arith.constant 0.000000e+00 : f32
      %34 = vector.broadcast %cst_18 : f32 to vector<8x1xf32>
      %35 = arith.cmpf oeq, %33, %34 : vector<8x1xf32>
      %cst_19 = arith.constant 1.000000e+00 : f32
      %36 = vector.broadcast %cst_19 : f32 to vector<8x1xf32>
      %37 = arith.select %35, %36, %33 : vector<8x1xi1>, vector<8x1xf32>
      %c0_20 = arith.constant 0 : index
      %c0_21 = arith.constant 0 : index
      %38 = vector.load %arg5[%c0_20, %c0_21] : memref<8x32xf32, #tpu.memory_space<vmem>>, vector<8x32xf32>
      %39 = tpu.reciprocal %37 : vector<8x1xf32> -> vector<8x1xf32>
      %40 = vector.broadcast %39 : vector<8x1xf32> to vector<8x32xf32>
      %41 = arith.mulf %38, %40 : vector<8x32xf32>
      %c0_22 = arith.constant 0 : index
      %c0_23 = arith.constant 0 : index
      %42 = vector.load %arg4[%c0_22, %c0_23] : memref<8x32xf32, #tpu.memory_space<vmem>>, vector<8x32xf32>
      tpu.vector_store %arg4[%c0_22, %c0_23], %41 {strides = array<i32>} : memref<8x32xf32, #tpu.memory_space<vmem>>, vector<8x32xf32>,
    } else {
    }
    return
  }
  func.func @transform_0(%arg0: i32, %arg1: i32) -> (i32, i32) {
    %c0_i32 = arith.constant 0 : i32
    %c0_i32_0 = arith.constant 0 : i32
    return %c0_i32, %arg1 : i32, i32
  }
  func.func @transform_1(%arg0: i32, %arg1: i32) -> (i32, i32) {
    %c0_i32 = arith.constant 0 : i32
    return %arg1, %arg0 : i32, i32
  }
  func.func @transform_2(%arg0: i32, %arg1: i32) -> (i32, i32) {
    %c0_i32 = arith.constant 0 : i32
    %c0_i32_0 = arith.constant 0 : i32
    return %c0_i32, %arg0 : i32, i32
  }
}

</mosaic_0001>

<llo_original>
// kernel: tpu_custom_call.1
$region0: #{tpu_custom_call.1}
  #allocation0 [shape = 'u32[]', space=smem, size = 0x4, offset = 0x4, fixed_abs, tag = 'smem constant byte address 0x4 - core index']
  #allocation1 [shape = 'u32[144,128]{1,0:T(1,128)}', space=vmem, size = 0x12000, scoped, tag = 'internal scratch']
  #allocation2 [shape = 'f32[8,32]{1,0:T(8,128)}', space=vmem, size = 0x1000, scoped, tag = 'scratch operand']
  #allocation3 [shape = 'f32[8,1]{1,0:T(8,128)}', space=vmem, size = 0x1000, scoped, tag = 'scratch operand']
  %s0 = inlined_call_operand.hbm [shape: s32[1,128], index: 0, kind: input, shape index: {}]
  %s1 = inlined_call_operand.hbm [shape: f32[8,32], index: 1, kind: input, shape index: {}]
  %s2 = inlined_call_operand.hbm [shape: f32[8,32], index: 2, kind: output, shape index: {}]
  %s3 = sld [smem:[#allocation0]]
  $region34: #{tpu_custom_call.1} parent=0
    _
  %s5 = ssub.s32 1, %s3
  %s6 = scalar_select 0, %s5, %s3
  $region1: #{tpu_custom_call.1} parent=0
    #allocation4 [shape = 'u8[512]{0}', space=vmem, size = 0x400, scoped, tag = 'input window, operand 0, single buffered']
    #allocation5 [shape = 's32[1]{0}', space=sflag, size = 0x4, scoped, tag = 'scoped memory for tpu_custom_call.1']
    #allocation6 [shape = 's32[1]{0}', space=sflag, size = 0x4, scoped, tag = 'scoped memory for tpu_custom_call.1']
    #allocation7 [shape = 'u8[65536]{0}', space=vmem, size = 0x10000, scoped, tag = 'input window, operand 1, single buffered']
    #allocation8 [shape = 's32[1]{0}', space=sflag, size = 0x4, scoped, tag = 'scoped memory for tpu_custom_call.1']
    #allocation9 [shape = 'u8[4096]{0}', space=vmem, size = 0x1000, scoped, tag = 'output window, operand 0, single buffered']
    %7 = vsyncpa [#allocation5], 0
    %8 = vsyncpa [#allocation8], 0
    %9 = vsyncpa [#allocation6], 0
    // Predicated region
    $region2: #{tpu_custom_call.1} parent=1 // pred_check
      _
    $region3: #{tpu_custom_call.1} parent=1 // pred_check_branch
      %11 = sbr.rel (0) target = $region5
    $region4: #{tpu_custom_call.1} parent=1 // pred_region
      %s13 = ssub.s32 16, 16
      %14 = vsyncadd [#allocation5], %s13
      %s16 = sshll.u32 [#allocation4], 4
      %s17 = int_to_ptr.vmem [resolvable:$true] %s16
      %19 = dma.hbm_to_vmem [thread:$0]  %s0, 16, %s17, [#allocation5]
    $region5: #{tpu_custom_call.1} parent=1 // pred_fallthru
      _
    // Predicated region
    $region6: #{tpu_custom_call.1} parent=1 // pred_check
      _
    $region7: #{tpu_custom_call.1} parent=1 // pred_check_branch
      %21 = sbr.rel (0) target = $region9
    $region8: #{tpu_custom_call.1} parent=1 // pred_region
      %s23 = ssub.s32 2048, 128
      %24 = vsyncadd [#allocation8], %s23
      %s25 = sshll.u32 [#allocation7], 4
      %s26 = int_to_ptr.vmem [resolvable:$true] %s25
      %31 = dma.hbm_to_vmem [thread:$0]  %s1, 128, %s26, [#allocation8], 128, 128, 8
    $region9: #{tpu_custom_call.1} parent=1 // pred_fallthru
      _
    // Predicated region
    $region10: #{tpu_custom_call.1} parent=1 // pred_check
      _
    $region11: #{tpu_custom_call.1} parent=1 // pred_check_branch
      %33 = sbr.rel (0) target = $region13
    $region12: #{tpu_custom_call.1} parent=1 // pred_region
      %34 = dma.done [#allocation5], 16
    $region13: #{tpu_custom_call.1} parent=1 // pred_fallthru
      _
    // Predicated region
    $region14: #{tpu_custom_call.1} parent=1 // pred_check
      _
    $region15: #{tpu_custom_call.1} parent=1 // pred_check_branch
      %36 = sbr.rel (0) target = $region17
    $region16: #{tpu_custom_call.1} parent=1 // pred_region
      %37 = dma.done [#allocation8], 2048
    $region17: #{tpu_custom_call.1} parent=1 // pred_fallthru
      _
    %p38 = scmp.eq.s32.totalorder 0, 0
    // Predicated region
    $region18: #{tpu_custom_call.1} parent=1 // pred_check
      %p39 = pneg %p38
    $region19: #{tpu_custom_call.1} parent=1 // pred_check_branch
      %41 = sbr.rel (%p39) target = $region21
    $region20: #{tpu_custom_call.1} parent=1 // pred_region
      %vm42 = vcmask 261120
      %43 = vst.msk [vmem:[#allocation2] sm:$0xff] %vm42, 0.0
      %vm44 = vcmask 7168
      %45 = vst.msk [vmem:[#allocation3] sm:$0xff] %vm44, 0.0
    $region21: #{tpu_custom_call.1} parent=1 // pred_fallthru
      _
    %v46 = vld [vmem:[#allocation7] sm:$0xff]
    %v47 = vld [vmem:[#allocation7 + $0x8] sm:$0xff]
    %v48 = vld [vmem:[#allocation7 + $0x10] sm:$0xff]
    %v49 = vld [vmem:[#allocation7 + $0x18] sm:$0xff]
    %v50 = vld [vmem:[#allocation7 + $0x20] sm:$0xff]
    %v51 = vld [vmem:[#allocation7 + $0x28] sm:$0xff]
    %v52 = vld [vmem:[#allocation7 + $0x30] sm:$0xff]
    %v53 = vld [vmem:[#allocation7 + $0x38] sm:$0xff]
    %v54 = vld [vmem:[#allocation7 + $0x40] sm:$0xff]
    %v55 = vld [vmem:[#allocation7 + $0x48] sm:$0xff]
    %v56 = vld [vmem:[#allocation7 + $0x50] sm:$0xff]
    %v57 = vld [vmem:[#allocation7 + $0x58] sm:$0xff]
    %v58 = vld [vmem:[#allocation7 + $0x60] sm:$0xff]
    %v59 = vld [vmem:[#allocation7 + $0x68] sm:$0xff]
    %v60 = vld [vmem:[#allocation7 + $0x70] sm:$0xff]
    %v61 = vld [vmem:[#allocation7 + $0x78] sm:$0xff]
    %s62 = smul.u32 0, 128
    %v63 = vlaneseq
    %v64 = vshrl.u32 %v63, 7
    %v65 = vadd.s32 %v64, 8
    %v66 = vadd.s32 %v64, 16
    %v67 = vadd.s32 %v64, 24
    %v68 = vadd.s32 %v64, 32
    %v69 = vadd.s32 %v64, 40
    %v70 = vadd.s32 %v64, 48
    %v71 = vadd.s32 %v64, 56
    %v72 = vadd.s32 %v64, 64
    %v73 = vadd.s32 %v64, 72
    %v74 = vadd.s32 %v64, 80
    %v75 = vadd.s32 %v64, 88
    %v76 = vadd.s32 %v64, 96
    %v77 = vadd.s32 %v64, 104
    %v78 = vadd.s32 %v64, 112
    %v79 = vadd.s32 %v64, 120
    %v80 = vstv %s62
    %v81 = vadd.s32 %v80, %v64
    %v82 = vadd.s32 %v80, %v65
    %v83 = vadd.s32 %v80, %v66
    %v84 = vadd.s32 %v80, %v67
    %v85 = vadd.s32 %v80, %v68
    %v86 = vadd.s32 %v80, %v69
    %v87 = vadd.s32 %v80, %v70
    %v88 = vadd.s32 %v80, %v71
    %v89 = vadd.s32 %v80, %v72
    %v90 = vadd.s32 %v80, %v73
    %v91 = vadd.s32 %v80, %v74
    %v92 = vadd.s32 %v80, %v75
    %v93 = vadd.s32 %v80, %v76
    %v94 = vadd.s32 %v80, %v77
    %v95 = vadd.s32 %v80, %v78
    %v96 = vadd.s32 %v80, %v79
    %vm97 = vcmp.lt.s32.totalorder %v81, 8
    %vm98 = vcmp.lt.s32.totalorder %v82, 8
    %vm99 = vcmp.lt.s32.totalorder %v83, 8
    %vm100 = vcmp.lt.s32.totalorder %v84, 8
    %vm101 = vcmp.lt.s32.totalorder %v85, 8
    %vm102 = vcmp.lt.s32.totalorder %v86, 8
    %vm103 = vcmp.lt.s32.totalorder %v87, 8
    %vm104 = vcmp.lt.s32.totalorder %v88, 8
    %vm105 = vcmp.lt.s32.totalorder %v89, 8
    %vm106 = vcmp.lt.s32.totalorder %v90, 8
    %vm107 = vcmp.lt.s32.totalorder %v91, 8
    %vm108 = vcmp.lt.s32.totalorder %v92, 8
    %vm109 = vcmp.lt.s32.totalorder %v93, 8
    %vm110 = vcmp.lt.s32.totalorder %v94, 8
    %vm111 = vcmp.lt.s32.totalorder %v95, 8
    %vm112 = vcmp.lt.s32.totalorder %v96, 8
    %v113 = vsel %vm97, %v46, 0.0
    %v114 = vsel %vm98, %v47, 0.0
    %v115 = vsel %vm99, %v48, 0.0
    %v116 = vsel %vm100, %v49, 0.0
    %v117 = vsel %vm101, %v50, 0.0
    %v118 = vsel %vm102, %v51, 0.0
    %v119 = vsel %vm103, %v52, 0.0
    %v120 = vsel %vm104, %v53, 0.0
    %v121 = vsel %vm105, %v54, 0.0
    %v122 = vsel %vm106, %v55, 0.0
    %v123 = vsel %vm107, %v56, 0.0
    %v124 = vsel %vm108, %v57, 0.0
    %v125 = vsel %vm109, %v58, 0.0
    %v126 = vsel %vm110, %v59, 0.0
    %v127 = vsel %vm111, %v60, 0.0
    %v128 = vsel %vm112, %v61, 0.0
    %v129 = vld [vmem:[#allocation4] sm:$0x1]
    %v130 = vlaneseq
    %v131 = vshrl.u32 %v130, 7
    %v132 = vsub.s32 0, %v131
    %v133 = vrot.slane %v129, %v132
    %vm134 = vcmp.eq.s32.totalorder %v64, %v133
    %v135 = vld [vmem:[#allocation2] sm:$0xff]
    %v136 = vsel %vm134, 1, 0
    %v137 = vcvt.s32.f32 %v136
    %138 = vmatprep.subr.mxu0 0.0
    %139 = vmatpush1.msra.mxu0 %v128
    %140 = vmatprep.subr.mxu0 0.0
    %141 = vmatpush1.msra.mxu0 %v127
    %142 = vmatprep.subr.mxu0 0.0
    %143 = vmatpush1.msra.mxu0 %v126
    %144 = vmatprep.subr.mxu0 0.0
    %145 = vmatpush1.msra.mxu0 %v125
    %146 = vmatprep.subr.mxu0 0.0
    %147 = vmatpush1.msra.mxu0 %v124
    %148 = vmatprep.subr.mxu0 0.0
    %149 = vmatpush1.msra.mxu0 %v123
    %150 = vmatprep.subr.mxu0 0.0
    %151 = vmatpush1.msra.mxu0 %v122
    %152 = vmatprep.subr.mxu0 0.0
    %153 = vmatpush1.msra.mxu0 %v121
    %154 = vmatprep.subr.mxu0 0.0
    %155 = vmatpush1.msra.mxu0 %v120
    %156 = vmatprep.subr.mxu0 0.0
    %157 = vmatpush1.msra.mxu0 %v119
    %158 = vmatprep.subr.mxu0 0.0
    %159 = vmatpush1.msra.mxu0 %v118
    %160 = vmatprep.subr.mxu0 0.0
    %161 = vmatpush1.msra.mxu0 %v117
    %162 = vmatprep.subr.mxu0 0.0
    %163 = vmatpush1.msra.mxu0 %v116
    %164 = vmatprep.subr.mxu0 0.0
    %165 = vmatpush1.msra.mxu0 %v115
    %166 = vmatprep.subr.mxu0 0.0
    %167 = vmatpush1.msra.mxu0 %v114
    %168 = vmatprep.subr.mxu0 0.0
    %169 = vmatpush1.msra.mxu0 %v113
    %170 = vmatprep.subr.mxu0 0.0
    %171 = vmatpush2.msra.mxu0 0.0
    %172 = vmatprep.subr.mxu0 0.0
    %173 = vmatpush2.msra.mxu0 0.0
    %174 = vmatprep.subr.mxu0 0.0
    %175 = vmatpush2.msra.mxu0 0.0
    %176 = vmatprep.subr.mxu0 0.0
    %177 = vmatpush2.msra.mxu0 0.0
    %178 = vmatprep.subr.mxu0 0.0
    %179 = vmatpush2.msra.mxu0 0.0
    %180 = vmatprep.subr.mxu0 0.0
    %181 = vmatpush2.msra.mxu0 0.0
    %182 = vmatprep.subr.mxu0 0.0
    %183 = vmatpush2.msra.mxu0 0.0
    %184 = vmatprep.subr.mxu0 0.0
    %185 = vmatpush2.msra.mxu0 0.0
    %186 = vmatprep.subr.mxu0 0.0
    %187 = vmatpush2.msra.mxu0 0.0
    %188 = vmatprep.subr.mxu0 0.0
    %189 = vmatpush2.msra.mxu0 0.0
    %190 = vmatprep.subr.mxu0 0.0
    %191 = vmatpush2.msra.mxu0 0.0
    %192 = vmatprep.subr.mxu0 0.0
    %193 = vmatpush2.msra.mxu0 0.0
    %194 = vmatprep.subr.mxu0 0.0
    %195 = vmatpush2.msra.mxu0 0.0
    %196 = vmatprep.subr.mxu0 0.0
    %197 = vmatpush2.msra.mxu0 0.0
    %198 = vmatprep.subr.mxu0 0.0
    %199 = vmatpush2.msra.mxu0 0.0
    %200 = vmatprep.subr.mxu0 0.0
    %201 = vmatpush2.msra.mxu0 0.0
    %202 = vmatprep.mubr.f32.mxu0 0.0
    %203 = vmatmul.mubr.f32.gmra.mxu0 %v137
    %v204 = vpop.f32.mrf.mxu0
    %v205 = vadd.f32 0.0, %v204
    %v206 = vpop.f32.mrf.mxu0
    %207 = vdwg.mxu0
    %v208 = vadd.f32 %v135, %v205
    %vm209 = vcmask 261120
    %210 = vst.msk [vmem:[#allocation2] sm:$0xff] %vm209, %v208
    %v211 = vld [vmem:[#allocation3] sm:$0xff]
    %212 = vadd.xlane.f32.xlu0 %v137
    %v213 = vpop.xlane.xlu0 %212
    %v214 = vadd.f32 %v211, %v213
    %vm215 = vcmask 7168
    %216 = vst.msk [vmem:[#allocation3] sm:$0xff] %vm215, %v214
    // Predicated region
    $region22: #{tpu_custom_call.1} parent=1 // pred_check
      %p217 = pneg %p38
    $region23: #{tpu_custom_call.1} parent=1 // pred_check_branch
      %219 = sbr.rel (%p217) target = $region25
    $region24: #{tpu_custom_call.1} parent=1 // pred_region
      %v220 = vld [vmem:[#allocation3] sm:$0xff]
      %vm221 = vcmp.eq.f32.partialorder %v220, 0.0
      %v222 = vsel %vm221, 1.0, %v220
      %v223 = vld [vmem:[#allocation2] sm:$0xff]
      %v224 = vrcp.pop %v222
      %226 = vset.pattern.permute.xlu0 0
      %227 = vperm.xlu0 %226, %v224
      %v228 = vpop.permute.xlu0 %227
      %v230 = vmul.f32 %v223, %v228
      %231 = vst.msk [vmem:[#allocation9] sm:$0xff] %vm209, %v230
    $region25: #{tpu_custom_call.1} parent=1 // pred_fallthru
      _
    // Predicated region
    $region26: #{tpu_custom_call.1} parent=1 // pred_check
      _
    $region27: #{tpu_custom_call.1} parent=1 // pred_check_branch
      %233 = sbr.rel (0) target = $region29
    $region28: #{tpu_custom_call.1} parent=1 // pred_region
      %s235 = ssub.s32 128, 128
      %236 = vsyncadd [#allocation6], %s235
      %s238 = sshll.u32 [#allocation9], 4
      %s239 = int_to_ptr.vmem [resolvable:$true] %s238
      %241 = dma.vmem_to_hbm [thread:$0]  %s239, 128, %s2, [#allocation6]
    $region29: #{tpu_custom_call.1} parent=1 // pred_fallthru
      _
    // Predicated region
    $region30: #{tpu_custom_call.1} parent=1 // pred_check
      _
    $region31: #{tpu_custom_call.1} parent=1 // pred_check_branch
      %243 = sbr.rel (0) target = $region33
    $region32: #{tpu_custom_call.1} parent=1 // pred_region
      %244 = dma.done [#allocation6], 128
    $region33: #{tpu_custom_call.1} parent=1 // pred_fallthru
      _
    %245 = vsyncpa [#allocation5], 1
    %246 = vsyncpa [#allocation8], 1
    %247 = vsyncpa [#allocation6], 1

</llo_original>
